<compile_context>
chip_gen: v5e
topology: v5e:2x2
jax: 0.10.0
libtpu: 0.0.40
codegen_flags: <defaults>
</compile_context>

<pallas_src>
import functools

import jax
import jax.numpy as jnp
from jax.experimental import pallas as pl
from jax.experimental.pallas import tpu as pltpu


def _tile_bias(b_ref, n_cols):
    """Replicate a (out_f, 128) f32 lane-group bias to (out_f, n_cols)."""
    b = b_ref[...]
    reps = n_cols // b.shape[1]
    return jnp.tile(b, (1, reps)) if reps > 1 else b


def _trunknet_kernel(x_ref,
                     w1_ref, b1_ref,
                     w2_ref, b2_ref,
                     w3_ref, b3_ref,
                     w4_ref, b4_ref,
                     w5_ref, b5_ref,
                     o_ref,
                     *, bf16_epilogue):
    """Fused feature-major MLP: h_{l+1} = tanh(W_l @ h_l + b_l), 5 layers."""
    x = x_ref[...]                       # (in_dim, Bc)  f32
    w1 = w1_ref[...]                     # (width, in_dim) f32
    bc = x.shape[1]
    in_dim = x.shape[0]

    # ---- layer 1 on the VPU: contraction depth == in_dim (tiny; the MXU would
    # ---- waste >96% of the systolic array) -----------------------------------
    acc = w1[:, 0:1] * x[0:1, :]         # (width, 1) * (1, Bc) -> (width, Bc)
    for k in range(1, in_dim):           # static Python loop, in_dim is tiny
        acc = acc + w1[:, k:k + 1] * x[k:k + 1, :]
    pre = acc + _tile_bias(b1_ref, bc)
    if bf16_epilogue:
        h = jnp.tanh(pre.astype(jnp.bfloat16))   # bf16 EUP (v6e/v7x)
    else:
        h = jnp.tanh(pre)                        # f32 EUP (v5e)

    # ---- layers 2..5 on the MXU: bf16 operands, f32 accumulation ------------
    def mxu_layer(h, w_ref, b_ref, *, final):
        hw = h if h.dtype == w_ref.dtype else h.astype(w_ref.dtype)
        y = jnp.dot(w_ref[...], hw, preferred_element_type=jnp.float32)
        pre = y + _tile_bias(b_ref, bc)
        if final or not bf16_epilogue:
            return jnp.tanh(pre)                        # f32 tanh
        return jnp.tanh(pre.astype(jnp.bfloat16))       # bf16 tanh, feeds next dot

    h = mxu_layer(h, w2_ref, b2_ref, final=False)
    h = mxu_layer(h, w3_ref, b3_ref, final=False)
    h = mxu_layer(h, w4_ref, b4_ref, final=False)
    h = mxu_layer(h, w5_ref, b5_ref, final=True)   # final Linear + self.out = Tanh()

    o_ref[...] = h.astype(o_ref.dtype)   # (out_dim, Bc): lane-dense, unmasked store


def trunknet_forward(x, params, *, block_cols=4096, mxu_dtype=jnp.bfloat16,
                     feature_major_output=False, core_parallel=False):
    """Fused TrunkNet forward pass.

    x:      (N, in_dim) float32 (same row-major interface as the torch module)
    params: list of (W, b) in torch.nn.Linear layout, W: (out_f, in_f), b: (out_f,)
    feature_major_output: return (out_dim, N) and skip the output transpose.
    """
    n, in_dim = x.shape
    out_dim = params[-1][0].shape[0]

    # --- per-generation switches (host-side, cheap) ---------------------------
    kind = getattr(jax.devices()[0], "device_kind", "").lower()
    is_v7 = "v7" in kind
    bf16_epilogue = ("v6" in kind) or is_v7   # v5e has no bf16 VPU/EUP

    # --- batch tiling: batch lives on the lane axis inside the kernel ---------
    n_pad = pl.cdiv(n, 128) * 128                      # pad N to a 128 multiple
    max_bc = 8192 if is_v7 else 16384                  # v7x VMEM is 64 MiB
    block_cols = max(128, min(int(block_cols), max_bc))
    block_cols = (block_cols // 128) * 128
    if block_cols > n_pad:
        block_cols = n_pad
    if block_cols == n_pad and n_pad >= 256:
        # keep grid >= 2: pipeline overlap, and both v7x TensorCores get work
        block_cols = max(128, ((n_pad // 2) // 128) * 128)
    n_pad = pl.cdiv(n_pad, block_cols) * block_cols
    grid = (n_pad // block_cols,)

    # TODO(synk): accepting feature-major x (and emitting feature-major output by
    # default) would remove the two wrapper-side HBM transpose passes entirely.
    x_t = x.T                                          # (in_dim, N) feature-major
    if n_pad != n:
        x_t = jnp.pad(x_t, ((0, 0), (0, n_pad - n)))

    # --- pack parameters: layer-1 weight f32 (VPU path), layers 2..5 bf16 (MXU),
    # --- biases f32 pre-broadcast to one full lane group (out_f, 128) ----------
    flat_params = []
    for li, (w, b) in enumerate(params):
        flat_params.append(w.astype(jnp.float32 if li == 0 else mxu_dtype))
        flat_params.append(jnp.broadcast_to(
            b.astype(jnp.float32).reshape(-1, 1), (b.shape[0], 128)))

    # --- cost estimate: helps XLA schedule around the custom call -------------
    flops = 2 * n_pad * sum(int(w.shape[0]) * int(w.shape[1]) for w, _ in params)
    transcendentals = n_pad * sum(int(w.shape[0]) for w, _ in params)
    param_bytes = sum(int(p.size) * p.dtype.itemsize for p in flat_params)
    cost = pl.CostEstimate(
        flops=flops,
        transcendentals=transcendentals,
        bytes_accessed=n_pad * (in_dim + out_dim) * 4 + param_bytes,
    )

    x_spec = pl.BlockSpec((in_dim, block_cols), lambda i: (0, i))
    out_spec = pl.BlockSpec((out_dim, block_cols), lambda i: (0, i))
    # Grid-invariant params: plain BlockSpecs; Pallas skips re-DMA when the
    # index_map returns the same block every step.
    param_specs = [pl.BlockSpec(p.shape, lambda i: (0, 0)) for p in flat_params]

    batch_semantics = pltpu.CORE_PARALLEL if (core_parallel and is_v7) else pltpu.PARALLEL

    kernel = functools.partial(_trunknet_kernel, bf16_epilogue=bf16_epilogue)
    out_t = pl.pallas_call(
        kernel,
        grid=grid,
        in_specs=[x_spec] + param_specs,
        out_specs=out_spec,
        out_shape=jax.ShapeDtypeStruct((out_dim, n_pad), jnp.float32),
        compiler_params=pltpu.CompilerParams(
            dimension_semantics=(batch_semantics,),
            vmem_limit_bytes=(32 if is_v7 else 64) * 1024 * 1024,
        ),
        cost_estimate=cost,
    )(x_t, *flat_params)

    if feature_major_output:
        return out_t[:, :n]                            # (out_dim, N), no transpose
    return out_t[:, :n].T                              # torch-compatible (N, out_dim)


def init_trunknet_params(key, in_dim, out_dim, width=64):
    """torch.nn.Linear layout/init: W (out_f, in_f), b (out_f,), U[-1/sqrt(fan_in), +)."""
    dims = [(in_dim, width), (width, width), (width, width), (width, width),
            (width, out_dim)]
    params = []
    for fan_in, fan_out in dims:
        key, kw, kb = jax.random.split(key, 3)
        bound = 1.0 / (fan_in ** 0.5)
        w = jax.random.uniform(kw, (fan_out, fan_in), jnp.float32, -bound, bound)
        b = jax.random.uniform(kb, (fan_out,), jnp.float32, -bound, bound)
        params.append((w, b))
    return params


def trunknet_reference(x, params):
    """Pure-JAX f32 reference of the torch forward pass."""
    h = x
    for w, b in params:
        h = jnp.tanh(h @ w.T + b)
    return h


if __name__ == "__main__":
    key = jax.random.PRNGKey(0)
    in_dim, out_dim, width = 4, 16, 64        # module default width=64
    batch = 512

    kx, kp = jax.random.split(key)
    x = jax.random.normal(kx, (batch, in_dim), dtype=jnp.float32)
    params = init_trunknet_params(kp, in_dim, out_dim, width)

    # block_cols=256 with batch=512 -> grid=(2,): exercises batch tiling, the
    # pipelined parallel grid axis, and the in-kernel lane-group bias replication.
    out = trunknet_forward(x, params, block_cols=256)
    out = jax.block_until_ready(out)

    ref = trunknet_reference(x, params)
    assert out.shape == (batch, out_dim)
    max_err = float(jnp.max(jnp.abs(out - ref)))
    # bf16 MXU operands (and, on v6e/v7x, a bf16 tanh epilogue) differ from the
    # pure-f32 reference in low-order bits; tolerance loosened accordingly.
    assert max_err < 2e-2, f"mismatch vs reference: max|err| = {max_err}"

    print("KERNEL_OK")
</pallas_src>

<mosaic_0001>
module attributes {stable_mosaic.version = 11 : i64} {
  func.func @_trunknet_kernel(%arg0: i32, %arg1: memref<4x256xf32, #tpu.memory_space<vmem>>, %arg2: memref<64x4xf32, #tpu.memory_space<vmem>>, %arg3: memref<64x128xf32, #tpu.memory_space<vmem>>, %arg4: memref<64x64xbf16, #tpu.memory_space<vmem>>, %arg5: memref<64x128xf32, #tpu.memory_space<vmem>>, %arg6: memref<64x64xbf16, #tpu.memory_space<vmem>>, %arg7: memref<64x128xf32, #tpu.memory_space<vmem>>, %arg8: memref<64x64xbf16, #tpu.memory_space<vmem>>, %arg9: memref<64x128xf32, #tpu.memory_space<vmem>>, %arg10: memref<16x64xbf16, #tpu.memory_space<vmem>>, %arg11: memref<16x128xf32, #tpu.memory_space<vmem>>, %arg12: memref<16x256xf32, #tpu.memory_space<vmem>>) attributes {dimension_semantics = [#tpu.dimension_semantics<parallel>], iteration_bounds = array<i64: 2>, scalar_prefetch = 0 : i64, scratch_operands = 0 : i64, tpu.core_type = #tpu.core_type<tc>, window_params = [{transform_indices = @transform_0, window_bounds = array<i64: 4, 256>}, {pipeline_mode = #tpu.pipeline_mode<synchronous>, transform_indices = @transform_1, window_bounds = array<i64: 64, 4>}, {pipeline_mode = #tpu.pipeline_mode<synchronous>, transform_indices = @transform_2, window_bounds = array<i64: 64, 128>}, {pipeline_mode = #tpu.pipeline_mode<synchronous>, transform_indices = @transform_3, window_bounds = array<i64: 64, 64>}, {pipeline_mode = #tpu.pipeline_mode<synchronous>, transform_indices = @transform_4, window_bounds = array<i64: 64, 128>}, {pipeline_mode = #tpu.pipeline_mode<synchronous>, transform_indices = @transform_5, window_bounds = array<i64: 64, 64>}, {pipeline_mode = #tpu.pipeline_mode<synchronous>, transform_indices = @transform_6, window_bounds = array<i64: 64, 128>}, {pipeline_mode = #tpu.pipeline_mode<synchronous>, transform_indices = @transform_7, window_bounds = array<i64: 64, 64>}, {pipeline_mode = #tpu.pipeline_mode<synchronous>, transform_indices = @transform_8, window_bounds = array<i64: 64, 128>}, {pipeline_mode = #tpu.pipeline_mode<synchronous>, transform_indices = @transform_9, window_bounds = array<i64: 16, 64>}, {pipeline_mode = #tpu.pipeline_mode<synchronous>, transform_indices = @transform_10, window_bounds = array<i64: 16, 128>}, {transform_indices = @transform_11, window_bounds = array<i64: 16, 256>}]} {
    %c0 = arith.constant 0 : index
    %c0_0 = arith.constant 0 : index
    %0 = vector.load %arg1[%c0, %c0_0] : memref<4x256xf32, #tpu.memory_space<vmem>>, vector<4x256xf32>
    %c0_1 = arith.constant 0 : index
    %c0_2 = arith.constant 0 : index
    %1 = vector.load %arg2[%c0_1, %c0_2] : memref<64x4xf32, #tpu.memory_space<vmem>>, vector<64x4xf32>
    %2 = vector.extract_strided_slice %1 {offsets = [0, 0], sizes = [64, 1], strides = [1, 1]} : vector<64x4xf32> to vector<64x1xf32>
    %3 = vector.extract_strided_slice %0 {offsets = [0, 0], sizes = [1, 256], strides = [1, 1]} : vector<4x256xf32> to vector<1x256xf32>
    %4 = vector.broadcast %2 : vector<64x1xf32> to vector<64x256xf32>
    %5 = vector.broadcast %3 : vector<1x256xf32> to vector<64x256xf32>
    %6 = arith.mulf %4, %5 : vector<64x256xf32>
    %7 = vector.extract_strided_slice %1 {offsets = [0, 1], sizes = [64, 1], strides = [1, 1]} : vector<64x4xf32> to vector<64x1xf32>
    %8 = vector.extract_strided_slice %0 {offsets = [1, 0], sizes = [1, 256], strides = [1, 1]} : vector<4x256xf32> to vector<1x256xf32>
    %9 = vector.broadcast %7 : vector<64x1xf32> to vector<64x256xf32>
    %10 = vector.broadcast %8 : vector<1x256xf32> to vector<64x256xf32>
    %11 = arith.mulf %9, %10 : vector<64x256xf32>
    %12 = arith.addf %6, %11 : vector<64x256xf32>
    %13 = vector.extract_strided_slice %1 {offsets = [0, 2], sizes = [64, 1], strides = [1, 1]} : vector<64x4xf32> to vector<64x1xf32>
    %14 = vector.extract_strided_slice %0 {offsets = [2, 0], sizes = [1, 256], strides = [1, 1]} : vector<4x256xf32> to vector<1x256xf32>
    %15 = vector.broadcast %13 : vector<64x1xf32> to vector<64x256xf32>
    %16 = vector.broadcast %14 : vector<1x256xf32> to vector<64x256xf32>
    %17 = arith.mulf %15, %16 : vector<64x256xf32>
    %18 = arith.addf %12, %17 : vector<64x256xf32>
    %19 = vector.extract_strided_slice %1 {offsets = [0, 3], sizes = [64, 1], strides = [1, 1]} : vector<64x4xf32> to vector<64x1xf32>
    %20 = vector.extract_strided_slice %0 {offsets = [3, 0], sizes = [1, 256], strides = [1, 1]} : vector<4x256xf32> to vector<1x256xf32>
    %21 = vector.broadcast %19 : vector<64x1xf32> to vector<64x256xf32>
    %22 = vector.broadcast %20 : vector<1x256xf32> to vector<64x256xf32>
    %23 = arith.mulf %21, %22 : vector<64x256xf32>
    %24 = arith.addf %18, %23 : vector<64x256xf32>
    %c0_3 = arith.constant 0 : index
    %c0_4 = arith.constant 0 : index
    %25 = vector.load %arg3[%c0_3, %c0_4] : memref<64x128xf32, #tpu.memory_space<vmem>>, vector<64x128xf32>
    %26 = tpu.concatenate %25, %25 in 1 : vector<64x128xf32>, vector<64x128xf32> -> vector<64x256xf32>
    %27 = arith.addf %24, %26 : vector<64x256xf32>
    %28 = math.tanh %27 : vector<64x256xf32>
    %29 = arith.truncf %28 : vector<64x256xf32> to vector<64x256xbf16>
    %c0_5 = arith.constant 0 : index
    %c0_6 = arith.constant 0 : index
    %30 = vector.load %arg4[%c0_5, %c0_6] : memref<64x64xbf16, #tpu.memory_space<vmem>>, vector<64x64xbf16>
    %cst = arith.constant dense<0.000000e+00> : vector<64x256xf32>
    %31 = tpu.matmul %30, %29, %cst {dimension_numbers = #tpu.dot_dimension_numbers<[1], [0], [0], [1], [0, 0, 1, 1], [], []>} : vector<64x64xbf16>, vector<64x256xbf16>, vector<64x256xf32> -> vector<64x256xf32>
    %c0_7 = arith.constant 0 : index
    %c0_8 = arith.constant 0 : index
    %32 = vector.load %arg5[%c0_7, %c0_8] : memref<64x128xf32, #tpu.memory_space<vmem>>, vector<64x128xf32>
    %33 = tpu.concatenate %32, %32 in 1 : vector<64x128xf32>, vector<64x128xf32> -> vector<64x256xf32>
    %34 = arith.addf %31, %33 : vector<64x256xf32>
    %35 = math.tanh %34 : vector<64x256xf32>
    %36 = arith.truncf %35 : vector<64x256xf32> to vector<64x256xbf16>
    %c0_9 = arith.constant 0 : index
    %c0_10 = arith.constant 0 : index
    %37 = vector.load %arg6[%c0_9, %c0_10] : memref<64x64xbf16, #tpu.memory_space<vmem>>, vector<64x64xbf16>
    %cst_11 = arith.constant dense<0.000000e+00> : vector<64x256xf32>
    %38 = tpu.matmul %37, %36, %cst_11 {dimension_numbers = #tpu.dot_dimension_numbers<[1], [0], [0], [1], [0, 0, 1, 1], [], []>} : vector<64x64xbf16>, vector<64x256xbf16>, vector<64x256xf32> -> vector<64x256xf32>
    %c0_12 = arith.constant 0 : index
    %c0_13 = arith.constant 0 : index
    %39 = vector.load %arg7[%c0_12, %c0_13] : memref<64x128xf32, #tpu.memory_space<vmem>>, vector<64x128xf32>
    %40 = tpu.concatenate %39, %39 in 1 : vector<64x128xf32>, vector<64x128xf32> -> vector<64x256xf32>
    %41 = arith.addf %38, %40 : vector<64x256xf32>
    %42 = math.tanh %41 : vector<64x256xf32>
    %43 = arith.truncf %42 : vector<64x256xf32> to vector<64x256xbf16>
    %c0_14 = arith.constant 0 : index
    %c0_15 = arith.constant 0 : index
    %44 = vector.load %arg8[%c0_14, %c0_15] : memref<64x64xbf16, #tpu.memory_space<vmem>>, vector<64x64xbf16>
    %cst_16 = arith.constant dense<0.000000e+00> : vector<64x256xf32>
    %45 = tpu.matmul %44, %43, %cst_16 {dimension_numbers = #tpu.dot_dimension_numbers<[1], [0], [0], [1], [0, 0, 1, 1], [], []>} : vector<64x64xbf16>, vector<64x256xbf16>, vector<64x256xf32> -> vector<64x256xf32>
    %c0_17 = arith.constant 0 : index
    %c0_18 = arith.constant 0 : index
    %46 = vector.load %arg9[%c0_17, %c0_18] : memref<64x128xf32, #tpu.memory_space<vmem>>, vector<64x128xf32>
    %47 = tpu.concatenate %46, %46 in 1 : vector<64x128xf32>, vector<64x128xf32> -> vector<64x256xf32>
    %48 = arith.addf %45, %47 : vector<64x256xf32>
    %49 = math.tanh %48 : vector<64x256xf32>
    %50 = arith.truncf %49 : vector<64x256xf32> to vector<64x256xbf16>
    %c0_19 = arith.constant 0 : index
    %c0_20 = arith.constant 0 : index
    %51 = vector.load %arg10[%c0_19, %c0_20] : memref<16x64xbf16, #tpu.memory_space<vmem>>, vector<16x64xbf16>
    %cst_21 = arith.constant dense<0.000000e+00> : vector<16x256xf32>
    %52 = tpu.matmul %51, %50, %cst_21 {dimension_numbers = #tpu.dot_dimension_numbers<[1], [0], [0], [1], [0, 0, 1, 1], [], []>} : vector<16x64xbf16>, vector<64x256xbf16>, vector<16x256xf32> -> vector<16x256xf32>
    %c0_22 = arith.constant 0 : index
    %c0_23 = arith.constant 0 : index
    %53 = vector.load %arg11[%c0_22, %c0_23] : memref<16x128xf32, #tpu.memory_space<vmem>>, vector<16x128xf32>
    %54 = tpu.concatenate %53, %53 in 1 : vector<16x128xf32>, vector<16x128xf32> -> vector<16x256xf32>
    %55 = arith.addf %52, %54 : vector<16x256xf32>
    %56 = math.tanh %55 : vector<16x256xf32>
    %c0_24 = arith.constant 0 : index
    %c0_25 = arith.constant 0 : index
    %57 = vector.load %arg12[%c0_24, %c0_25] : memref<16x256xf32, #tpu.memory_space<vmem>>, vector<16x256xf32>
    tpu.vector_store %arg12[%c0_24, %c0_25], %56 {strides = array<i32>} : memref<16x256xf32, #tpu.memory_space<vmem>>, vector<16x256xf32>,
    return
  }
  func.func @transform_0(%arg0: i32) -> (i32, i32) {
    %c0_i32 = arith.constant 0 : i32
    %c0_i32_0 = arith.constant 0 : i32
    return %c0_i32, %arg0 : i32, i32
  }
  func.func @transform_1(%arg0: i32) -> (i32, i32) {
    %c0_i32 = arith.constant 0 : i32
    %c0_i32_0 = arith.constant 0 : i32
    %c0_i32_1 = arith.constant 0 : i32
    return %c0_i32, %c0_i32_0 : i32, i32
  }
  func.func @transform_2(%arg0: i32) -> (i32, i32) {
    %c0_i32 = arith.constant 0 : i32
    %c0_i32_0 = arith.constant 0 : i32
    %c0_i32_1 = arith.constant 0 : i32
    return %c0_i32, %c0_i32_0 : i32, i32
  }
  func.func @transform_3(%arg0: i32) -> (i32, i32) {
    %c0_i32 = arith.constant 0 : i32
    %c0_i32_0 = arith.constant 0 : i32
    %c0_i32_1 = arith.constant 0 : i32
    return %c0_i32, %c0_i32_0 : i32, i32
  }
  func.func @transform_4(%arg0: i32) -> (i32, i32) {
    %c0_i32 = arith.constant 0 : i32
    %c0_i32_0 = arith.constant 0 : i32
    %c0_i32_1 = arith.constant 0 : i32
    return %c0_i32, %c0_i32_0 : i32, i32
  }
  func.func @transform_5(%arg0: i32) -> (i32, i32) {
    %c0_i32 = arith.constant 0 : i32
    %c0_i32_0 = arith.constant 0 : i32
    %c0_i32_1 = arith.constant 0 : i32
    return %c0_i32, %c0_i32_0 : i32, i32
  }
  func.func @transform_6(%arg0: i32) -> (i32, i32) {
    %c0_i32 = arith.constant 0 : i32
    %c0_i32_0 = arith.constant 0 : i32
    %c0_i32_1 = arith.constant 0 : i32
    return %c0_i32, %c0_i32_0 : i32, i32
  }
  func.func @transform_7(%arg0: i32) -> (i32, i32) {
    %c0_i32 = arith.constant 0 : i32
    %c0_i32_0 = arith.constant 0 : i32
    %c0_i32_1 = arith.constant 0 : i32
    return %c0_i32, %c0_i32_0 : i32, i32
  }
  func.func @transform_8(%arg0: i32) -> (i32, i32) {
    %c0_i32 = arith.constant 0 : i32
    %c0_i32_0 = arith.constant 0 : i32
    %c0_i32_1 = arith.constant 0 : i32
    return %c0_i32, %c0_i32_0 : i32, i32
  }
  func.func @transform_9(%arg0: i32) -> (i32, i32) {
    %c0_i32 = arith.constant 0 : i32
    %c0_i32_0 = arith.constant 0 : i32
    %c0_i32_1 = arith.constant 0 : i32
    return %c0_i32, %c0_i32_0 : i32, i32
  }
  func.func @transform_10(%arg0: i32) -> (i32, i32) {
    %c0_i32 = arith.constant 0 : i32
    %c0_i32_0 = arith.constant 0 : i32
    %c0_i32_1 = arith.constant 0 : i32
    return %c0_i32, %c0_i32_0 : i32, i32
  }
  func.func @transform_11(%arg0: i32) -> (i32, i32) {
    %c0_i32 = arith.constant 0 : i32
    %c0_i32_0 = arith.constant 0 : i32
    return %c0_i32, %arg0 : i32, i32
  }
}

</mosaic_0001>

<llo_original>
// kernel: tpu_custom_call.1
$region0: #{tpu_custom_call.1}
  #allocation0 [shape = 'u32[]', space=smem, size = 0x4, offset = 0x4, fixed_abs, tag = 'smem constant byte address 0x4 - core index']
  #allocation1 [shape = 'u32[72,128]{1,0:T(1,128)}', space=vmem, size = 0x9000, scoped, tag = 'internal scratch']
  %s0 = inlined_call_operand.hbm [shape: f32[4,512], index: 0, kind: input, shape index: {}]
  %s1 = inlined_call_operand.vmem [shape: f32[64,4], index: 1, kind: input, shape index: {}]
  %s2 = inlined_call_operand.vmem [shape: f32[64,128], index: 2, kind: input, shape index: {}]
  %s3 = inlined_call_operand.hbm [shape: bf16[64,64], index: 3, kind: input, shape index: {}]
  %s4 = inlined_call_operand.hbm [shape: f32[64,128], index: 4, kind: input, shape index: {}]
  %s5 = inlined_call_operand.hbm [shape: bf16[64,64], index: 5, kind: input, shape index: {}]
  %s6 = inlined_call_operand.hbm [shape: f32[64,128], index: 6, kind: input, shape index: {}]
  %s7 = inlined_call_operand.hbm [shape: bf16[64,64], index: 7, kind: input, shape index: {}]
  %s8 = inlined_call_operand.hbm [shape: f32[64,128], index: 8, kind: input, shape index: {}]
  %s9 = inlined_call_operand.vmem [shape: bf16[16,64], index: 9, kind: input, shape index: {}]
  %s10 = inlined_call_operand.hbm [shape: f32[16,128], index: 10, kind: input, shape index: {}]
  %s11 = inlined_call_operand.hbm [shape: f32[16,512], index: 11, kind: output, shape index: {}]
  %s12 = sld [smem:[#allocation0]]
  $region109: #{tpu_custom_call.1} parent=0
    _
  %s14 = ssub.s32 1, %s12
  %s15 = scalar_select 0, %s14, %s12
  $region1: #{tpu_custom_call.1} parent=0
    #allocation2 [shape = 'u8[8192]{0}', space=vmem, size = 0x2000, scoped, tag = 'input window, operand 0']
    #allocation3 [shape = 's32[2]{0}', space=sflag, size = 0x8, scoped, tag = 'scoped memory for tpu_custom_call.1']
    #allocation4 [shape = 's32[2]{0}', space=sflag, size = 0x8, scoped, tag = 'scoped memory for tpu_custom_call.1']
    #allocation5 [shape = 'u8[16384]{0}', space=vmem, size = 0x4000, scoped, tag = 'input window, operand 3, single buffered']
    #allocation6 [shape = 's32[1]{0}', space=sflag, size = 0x4, scoped, tag = 'scoped memory for tpu_custom_call.1']
    #allocation7 [shape = 'u8[32768]{0}', space=vmem, size = 0x8000, scoped, tag = 'input window, operand 4, single buffered']
    #allocation8 [shape = 'u8[16384]{0}', space=vmem, size = 0x4000, scoped, tag = 'input window, operand 5, single buffered']
    #allocation9 [shape = 's32[1]{0}', space=sflag, size = 0x4, scoped, tag = 'scoped memory for tpu_custom_call.1']
    #allocation10 [shape = 'u8[32768]{0}', space=vmem, size = 0x8000, scoped, tag = 'input window, operand 6, single buffered']
    #allocation11 [shape = 'u8[16384]{0}', space=vmem, size = 0x4000, scoped, tag = 'input window, operand 7, single buffered']
    #allocation12 [shape = 's32[1]{0}', space=sflag, size = 0x4, scoped, tag = 'scoped memory for tpu_custom_call.1']
    #allocation13 [shape = 'u8[32768]{0}', space=vmem, size = 0x8000, scoped, tag = 'input window, operand 8, single buffered']
    #allocation14 [shape = 'u8[8192]{0}', space=vmem, size = 0x2000, scoped, tag = 'input window, operand 10, single buffered']
    #allocation15 [shape = 's32[1]{0}', space=sflag, size = 0x4, scoped, tag = 'scoped memory for tpu_custom_call.1']
    #allocation16 [shape = 'u8[32768]{0}', space=vmem, size = 0x8000, scoped, tag = 'output window, operand 0']
    %16 = vsyncpa [#allocation3], 0
    %s17 = scalar_lea.sflag [#allocation3], 1
    %18 = vsyncpa %s17, 0
    %19 = vsyncpa [#allocation6], 0
    %20 = vsyncpa [#allocation9], 0
    %21 = vsyncpa [#allocation12], 0
    %22 = vsyncpa [#allocation15], 0
    %23 = vsyncpa [#allocation4], 0
    %s24 = scalar_lea.sflag [#allocation4], 1
    %25 = vsyncpa %s24, 0
    loop: start=0, step=1, limit=4
    $region2: #{tpu_custom_call.1} parent=1 // loop_pre_header
      _
    $region3: #{tpu_custom_call.1} parent=1 // loop_header
      %s27 = sphi 0, %s31
      %p28 = scmp.ge.s32.totalorder %s27, 4
      %s37 = sphi 0, %s39
      %s40 = sphi 0, %s37
      %s41 = sphi 0, %s40
      %s57 = sphi 0, %s41
      %s61 = sphi 0, %s61
      %s63 = sphi 0, %s61
      %s64 = sphi 0, %s63
      %s78 = sphi 0, %s64
      %s82 = sphi 0, %s82
      %s84 = sphi 0, %s82
      %s85 = sphi 0, %s84
      %s99 = sphi 0, %s85
      %s103 = sphi 0, %s103
      %s105 = sphi 0, %s103
      %s106 = sphi 0, %s105
      %s120 = sphi 0, %s106
      %s124 = sphi 0, %s124
      %s126 = sphi 0, %s124
      %s127 = sphi 0, %s126
      %s141 = sphi 0, %s127
      %s145 = sphi 0, %s145
      %s147 = sphi 0, %s145
      %s148 = sphi 0, %s147
      %s162 = sphi 0, %s148
      %s166 = sphi 0, %s166
      %s168 = sphi 0, %s166
      %s169 = sphi 0, %s168
      %s183 = sphi 0, %s169
      %s187 = sphi 0, %s187
      %s189 = sphi 0, %s187
      %s190 = sphi 0, %s189
      %s204 = sphi 0, %s190
      %s208 = sphi 0, %s208
      %s210 = sphi 0, %s208
      %s211 = sphi 0, %s210
      %s225 = sphi 0, %s211
      %s229 = sphi 0, %s229
      %s231 = sphi 0, %s229
      %s232 = sphi 0, %s231
      %s246 = sphi 0, %s232
      %s250 = sphi 0, %s250
      %s252 = sphi 0, %s250
      %s253 = sphi 0, %s252
      %s267 = sphi 0, %s253
      %s273 = sphi 0, %s275
      %s276 = sphi 0, %s273
      %s277 = sphi 0, %s276
      %s293 = sphi 0, %s277
    $region4: #{tpu_custom_call.1} parent=1 // loop_header_branch
      %30 = sbr.rel (%p28) target = $region8
    $region5: #{tpu_custom_call.1} parent=1 // loop_body
      %s32 = ssub.s32 %s27, 1
      %s33 = ssub.s32 %s27, 2
      %s34 = sadd.s32 %s27, 1
      %s35 = ssub.s32 %s27, %s34
      %p36 = scmp.eq.s32.totalorder %s35, 0
      %s38 = sadd.s32 %s37, 1
      %s39 = scalar_select %p36, %s37, %s38
      %p42 = pneg %p36
      %p43 = scmp.eq.s32.totalorder %s27, 1
      %p44 = por %p42, %p43
      %p45 = scmp.ne.s32.totalorder %s37, %s40
      %p46 = scmp.eq.s32.totalorder %s27, 0
      %p47 = por %p45, %p46
      %p48 = scmp.ne.s32.totalorder %s37, %s40
      %p49 = scmp.eq.s32.totalorder %s32, 1
      %p50 = por %p48, %p49
      %p51 = scmp.ne.s32.totalorder %s40, %s41
      %p52 = scmp.eq.s32.totalorder %s32, 0
      %p53 = por %p51, %p52
      %p54 = scmp.ne.s32.totalorder %s40, %s41
      %p55 = scmp.eq.s32.totalorder %s33, 1
      %p56 = por %p54, %p55
      %p58 = scmp.ne.s32.totalorder %s41, %s57
      %p59 = scmp.eq.s32.totalorder %s33, 0
      %p60 = por %p58, %p59
      %s62 = sadd.s32 %s61, 1
      %p65 = scmp.eq.s32.totalorder %s27, 1
      %p66 = scmp.ne.s32.totalorder %s61, %s63
      %p67 = scmp.eq.s32.totalorder %s27, 0
      %p68 = por %p66, %p67
      %p69 = scmp.ne.s32.totalorder %s61, %s63
      %p70 = scmp.eq.s32.totalorder %s32, 1
      %p71 = por %p69, %p70
      %p72 = scmp.ne.s32.totalorder %s63, %s64
      %p73 = scmp.eq.s32.totalorder %s32, 0
      %p74 = por %p72, %p73
      %p75 = scmp.ne.s32.totalorder %s63, %s64
      %p76 = scmp.eq.s32.totalorder %s33, 1
      %p77 = por %p75, %p76
      %p79 = scmp.ne.s32.totalorder %s64, %s78
      %p80 = scmp.eq.s32.totalorder %s33, 0
      %p81 = por %p79, %p80
      %s83 = sadd.s32 %s82, 1
      %p86 = scmp.eq.s32.totalorder %s27, 1
      %p87 = scmp.ne.s32.totalorder %s82, %s84
      %p88 = scmp.eq.s32.totalorder %s27, 0
      %p89 = por %p87, %p88
      %p90 = scmp.ne.s32.totalorder %s82, %s84
      %p91 = scmp.eq.s32.totalorder %s32, 1
      %p92 = por %p90, %p91
      %p93 = scmp.ne.s32.totalorder %s84, %s85
      %p94 = scmp.eq.s32.totalorder %s32, 0
      %p95 = por %p93, %p94
      %p96 = scmp.ne.s32.totalorder %s84, %s85
      %p97 = scmp.eq.s32.totalorder %s33, 1
      %p98 = por %p96, %p97
      %p100 = scmp.ne.s32.totalorder %s85, %s99
      %p101 = scmp.eq.s32.totalorder %s33, 0
      %p102 = por %p100, %p101
      %s104 = sadd.s32 %s103, 1
      %p107 = scmp.eq.s32.totalorder %s27, 1
      %p108 = scmp.ne.s32.totalorder %s103, %s105
      %p109 = scmp.eq.s32.totalorder %s27, 0
      %p110 = por %p108, %p109
      %p111 = scmp.ne.s32.totalorder %s103, %s105
      %p112 = scmp.eq.s32.totalorder %s32, 1
      %p113 = por %p111, %p112
      %p114 = scmp.ne.s32.totalorder %s105, %s106
      %p115 = scmp.eq.s32.totalorder %s32, 0
      %p116 = por %p114, %p115
      %p117 = scmp.ne.s32.totalorder %s105, %s106
      %p118 = scmp.eq.s32.totalorder %s33, 1
      %p119 = por %p117, %p118
      %p121 = scmp.ne.s32.totalorder %s106, %s120
      %p122 = scmp.eq.s32.totalorder %s33, 0
      %p123 = por %p121, %p122
      %s125 = sadd.s32 %s124, 1
      %p128 = scmp.eq.s32.totalorder %s27, 1
      %p129 = scmp.ne.s32.totalorder %s124, %s126
      %p130 = scmp.eq.s32.totalorder %s27, 0
      %p131 = por %p129, %p130
      %p132 = scmp.ne.s32.totalorder %s124, %s126
      %p133 = scmp.eq.s32.totalorder %s32, 1
      %p134 = por %p132, %p133
      %p135 = scmp.ne.s32.totalorder %s126, %s127
      %p136 = scmp.eq.s32.totalorder %s32, 0
      %p137 = por %p135, %p136
      %p138 = scmp.ne.s32.totalorder %s126, %s127
      %p139 = scmp.eq.s32.totalorder %s33, 1
      %p140 = por %p138, %p139
      %p142 = scmp.ne.s32.totalorder %s127, %s141
      %p143 = scmp.eq.s32.totalorder %s33, 0
      %p144 = por %p142, %p143
      %s146 = sadd.s32 %s145, 1
      %p149 = scmp.eq.s32.totalorder %s27, 1
      %p150 = scmp.ne.s32.totalorder %s145, %s147
      %p151 = scmp.eq.s32.totalorder %s27, 0
      %p152 = por %p150, %p151
      %p153 = scmp.ne.s32.totalorder %s145, %s147
      %p154 = scmp.eq.s32.totalorder %s32, 1
      %p155 = por %p153, %p154
      %p156 = scmp.ne.s32.totalorder %s147, %s148
      %p157 = scmp.eq.s32.totalorder %s32, 0
      %p158 = por %p156, %p157
      %p159 = scmp.ne.s32.totalorder %s147, %s148
      %p160 = scmp.eq.s32.totalorder %s33, 1
      %p161 = por %p159, %p160
      %p163 = scmp.ne.s32.totalorder %s148, %s162
      %p164 = scmp.eq.s32.totalorder %s33, 0
      %p165 = por %p163, %p164
      %s167 = sadd.s32 %s166, 1
      %p170 = scmp.eq.s32.totalorder %s27, 1
      %p171 = scmp.ne.s32.totalorder %s166, %s168
      %p172 = scmp.eq.s32.totalorder %s27, 0
      %p173 = por %p171, %p172
      %p174 = scmp.ne.s32.totalorder %s166, %s168
      %p175 = scmp.eq.s32.totalorder %s32, 1
      %p176 = por %p174, %p175
      %p177 = scmp.ne.s32.totalorder %s168, %s169
      %p178 = scmp.eq.s32.totalorder %s32, 0
      %p179 = por %p177, %p178
      %p180 = scmp.ne.s32.totalorder %s168, %s169
      %p181 = scmp.eq.s32.totalorder %s33, 1
      %p182 = por %p180, %p181
      %p184 = scmp.ne.s32.totalorder %s169, %s183
      %p185 = scmp.eq.s32.totalorder %s33, 0
      %p186 = por %p184, %p185
      %s188 = sadd.s32 %s187, 1
      %p191 = scmp.eq.s32.totalorder %s27, 1
      %p192 = scmp.ne.s32.totalorder %s187, %s189
      %p193 = scmp.eq.s32.totalorder %s27, 0
      %p194 = por %p192, %p193
      %p195 = scmp.ne.s32.totalorder %s187, %s189
      %p196 = scmp.eq.s32.totalorder %s32, 1
      %p197 = por %p195, %p196
      %p198 = scmp.ne.s32.totalorder %s189, %s190
      %p199 = scmp.eq.s32.totalorder %s32, 0
      %p200 = por %p198, %p199
      %p201 = scmp.ne.s32.totalorder %s189, %s190
      %p202 = scmp.eq.s32.totalorder %s33, 1
      %p203 = por %p201, %p202
      %p205 = scmp.ne.s32.totalorder %s190, %s204
      %p206 = scmp.eq.s32.totalorder %s33, 0
      %p207 = por %p205, %p206
      %s209 = sadd.s32 %s208, 1
      %p212 = scmp.eq.s32.totalorder %s27, 1
      %p213 = scmp.ne.s32.totalorder %s208, %s210
      %p214 = scmp.eq.s32.totalorder %s27, 0
      %p215 = por %p213, %p214
      %p216 = scmp.ne.s32.totalorder %s208, %s210
      %p217 = scmp.eq.s32.totalorder %s32, 1
      %p218 = por %p216, %p217
      %p219 = scmp.ne.s32.totalorder %s210, %s211
      %p220 = scmp.eq.s32.totalorder %s32, 0
      %p221 = por %p219, %p220
      %p222 = scmp.ne.s32.totalorder %s210, %s211
      %p223 = scmp.eq.s32.totalorder %s33, 1
      %p224 = por %p222, %p223
      %p226 = scmp.ne.s32.totalorder %s211, %s225
      %p227 = scmp.eq.s32.totalorder %s33, 0
      %p228 = por %p226, %p227
      %s230 = sadd.s32 %s229, 1
      %p233 = scmp.eq.s32.totalorder %s27, 1
      %p234 = scmp.ne.s32.totalorder %s229, %s231
      %p235 = scmp.eq.s32.totalorder %s27, 0
      %p236 = por %p234, %p235
      %p237 = scmp.ne.s32.totalorder %s229, %s231
      %p238 = scmp.eq.s32.totalorder %s32, 1
      %p239 = por %p237, %p238
      %p240 = scmp.ne.s32.totalorder %s231, %s232
      %p241 = scmp.eq.s32.totalorder %s32, 0
      %p242 = por %p240, %p241
      %p243 = scmp.ne.s32.totalorder %s231, %s232
      %p244 = scmp.eq.s32.totalorder %s33, 1
      %p245 = por %p243, %p244
      %p247 = scmp.ne.s32.totalorder %s232, %s246
      %p248 = scmp.eq.s32.totalorder %s33, 0
      %p249 = por %p247, %p248
      %s251 = sadd.s32 %s250, 1
      %p254 = scmp.eq.s32.totalorder %s27, 1
      %p255 = scmp.ne.s32.totalorder %s250, %s252
      %p256 = scmp.eq.s32.totalorder %s27, 0
      %p257 = por %p255, %p256
      %p258 = scmp.ne.s32.totalorder %s250, %s252
      %p259 = scmp.eq.s32.totalorder %s32, 1
      %p260 = por %p258, %p259
      %p261 = scmp.ne.s32.totalorder %s252, %s253
      %p262 = scmp.eq.s32.totalorder %s32, 0
      %p263 = por %p261, %p262
      %p264 = scmp.ne.s32.totalorder %s252, %s253
      %p265 = scmp.eq.s32.totalorder %s33, 1
      %p266 = por %p264, %p265
      %p268 = scmp.ne.s32.totalorder %s253, %s267
      %p269 = scmp.eq.s32.totalorder %s33, 0
      %p270 = por %p268, %p269
      %s271 = ssub.s32 %s27, %s34
      %p272 = scmp.eq.s32.totalorder %s271, 0
      %s274 = sadd.s32 %s273, 1
      %s275 = scalar_select %p272, %s273, %s274
      %p278 = pneg %p272
      %p279 = scmp.eq.s32.totalorder %s27, 1
      %p280 = por %p278, %p279
      %p281 = scmp.ne.s32.totalorder %s273, %s276
      %p282 = scmp.eq.s32.totalorder %s27, 0
      %p283 = por %p281, %p282
      %p284 = scmp.ne.s32.totalorder %s273, %s276
      %p285 = scmp.eq.s32.totalorder %s32, 1
      %p286 = por %p284, %p285
      %p287 = scmp.ne.s32.totalorder %s276, %s277
      %p288 = scmp.eq.s32.totalorder %s32, 0
      %p289 = por %p287, %p288
      %p290 = scmp.ne.s32.totalorder %s276, %s277
      %p291 = scmp.eq.s32.totalorder %s33, 1
      %p292 = por %p290, %p291
      %p294 = scmp.ne.s32.totalorder %s277, %s293
      %p295 = scmp.eq.s32.totalorder %s33, 0
      %p296 = por %p294, %p295
      %p297 = scmp.le.s32.totalorder 1, %s27
      %p298 = scmp.lt.s32.totalorder %s27, 3
      %p299 = pnand %p297, %p298
      %p300 = pneg %p299
      // Predicated region
      $region9: #{tpu_custom_call.1} parent=5 // pred_check
        _
      $region10: #{tpu_custom_call.1} parent=5 // pred_check_branch
        %302 = sbr.rel (%p299) target = $region12
      $region11: #{tpu_custom_call.1} parent=5 // pred_region
        %s303 = ssub.s32 %s27, 1
        // Predicated region
        $region13: #{tpu_custom_call.1} parent=11 // pred_check
          %p304 = pneg %p74
        $region14: #{tpu_custom_call.1} parent=11 // pred_check_branch
          %306 = sbr.rel (%p304) target = $region16
        $region15: #{tpu_custom_call.1} parent=11 // pred_region
          _
        $region16: #{tpu_custom_call.1} parent=11 // pred_fallthru
          _
        // Predicated region
        $region17: #{tpu_custom_call.1} parent=11 // pred_check
          %p307 = pneg %p95
        $region18: #{tpu_custom_call.1} parent=11 // pred_check_branch
          %309 = sbr.rel (%p307) target = $region20
        $region19: #{tpu_custom_call.1} parent=11 // pred_region
          _
        $region20: #{tpu_custom_call.1} parent=11 // pred_fallthru
          _
        // Predicated region
        $region21: #{tpu_custom_call.1} parent=11 // pred_check
          %p310 = pneg %p116
        $region22: #{tpu_custom_call.1} parent=11 // pred_check_branch
          %312 = sbr.rel (%p310) target = $region24
        $region23: #{tpu_custom_call.1} parent=11 // pred_region
          %314 = vsyncadd [#allocation6], 0
          %s315 = sshll.u32 %s3, 4
          %s316 = int_to_ptr.hbm [resolvable:$true] %s315
          %s317 = sshll.u32 [#allocation5], 4
          %s318 = int_to_ptr.vmem [resolvable:$true] %s317
          %323 = dma.hbm_to_vmem [thread:$0]  %s316, 512, %s318, [#allocation6], 64, 64, 4
        $region24: #{tpu_custom_call.1} parent=11 // pred_fallthru
          _
        // Predicated region
        $region25: #{tpu_custom_call.1} parent=11 // pred_check
          %p324 = pneg %p137
        $region26: #{tpu_custom_call.1} parent=11 // pred_check_branch
          %326 = sbr.rel (%p324) target = $region28
        $region27: #{tpu_custom_call.1} parent=11 // pred_region
          %328 = vsyncadd [#allocation6], 0
          %s329 = sshll.u32 %s4, 4
          %s330 = int_to_ptr.hbm [resolvable:$true] %s329
          %s331 = sshll.u32 [#allocation7], 4
          %s332 = int_to_ptr.vmem [resolvable:$true] %s331
          %337 = dma.hbm_to_vmem [thread:$0]  %s330, 1024, %s332, [#allocation6], 128, 128, 8
        $region28: #{tpu_custom_call.1} parent=11 // pred_fallthru
          _
        // Predicated region
        $region29: #{tpu_custom_call.1} parent=11 // pred_check
          %p338 = pneg %p158
        $region30: #{tpu_custom_call.1} parent=11 // pred_check_branch
          %340 = sbr.rel (%p338) target = $region32
        $region31: #{tpu_custom_call.1} parent=11 // pred_region
          %342 = vsyncadd [#allocation9], 0
          %s343 = sshll.u32 %s5, 4
          %s344 = int_to_ptr.hbm [resolvable:$true] %s343
          %s345 = sshll.u32 [#allocation8], 4
          %s346 = int_to_ptr.vmem [resolvable:$true] %s345
          %351 = dma.hbm_to_vmem [thread:$0]  %s344, 512, %s346, [#allocation9], 64, 64, 4
        $region32: #{tpu_custom_call.1} parent=11 // pred_fallthru
          _
        // Predicated region
        $region33: #{tpu_custom_call.1} parent=11 // pred_check
          %p352 = pneg %p179
        $region34: #{tpu_custom_call.1} parent=11 // pred_check_branch
          %354 = sbr.rel (%p352) target = $region36
        $region35: #{tpu_custom_call.1} parent=11 // pred_region
          %356 = vsyncadd [#allocation9], 0
          %s357 = sshll.u32 %s6, 4
          %s358 = int_to_ptr.hbm [resolvable:$true] %s357
          %s359 = sshll.u32 [#allocation10], 4
          %s360 = int_to_ptr.vmem [resolvable:$true] %s359
          %365 = dma.hbm_to_vmem [thread:$0]  %s358, 1024, %s360, [#allocation9], 128, 128, 8
        $region36: #{tpu_custom_call.1} parent=11 // pred_fallthru
          _
        // Predicated region
        $region37: #{tpu_custom_call.1} parent=11 // pred_check
          %p366 = pneg %p200
        $region38: #{tpu_custom_call.1} parent=11 // pred_check_branch
          %368 = sbr.rel (%p366) target = $region40
        $region39: #{tpu_custom_call.1} parent=11 // pred_region
          %370 = vsyncadd [#allocation12], 0
          %s371 = sshll.u32 %s7, 4
          %s372 = int_to_ptr.hbm [resolvable:$true] %s371
          %s373 = sshll.u32 [#allocation11], 4
          %s374 = int_to_ptr.vmem [resolvable:$true] %s373
          %379 = dma.hbm_to_vmem [thread:$0]  %s372, 512, %s374, [#allocation12], 64, 64, 4
        $region40: #{tpu_custom_call.1} parent=11 // pred_fallthru
          _
        // Predicated region
        $region41: #{tpu_custom_call.1} parent=11 // pred_check
          %p380 = pneg %p221
        $region42: #{tpu_custom_call.1} parent=11 // pred_check_branch
          %382 = sbr.rel (%p380) target = $region44
        $region43: #{tpu_custom_call.1} parent=11 // pred_region
          %384 = vsyncadd [#allocation12], 0
          %s385 = sshll.u32 %s8, 4
          %s386 = int_to_ptr.hbm [resolvable:$true] %s385
          %s387 = sshll.u32 [#allocation13], 4
          %s388 = int_to_ptr.vmem [resolvable:$true] %s387
          %393 = dma.hbm_to_vmem [thread:$0]  %s386, 1024, %s388, [#allocation12], 128, 128, 8
        $region44: #{tpu_custom_call.1} parent=11 // pred_fallthru
          _
        // Predicated region
        $region45: #{tpu_custom_call.1} parent=11 // pred_check
          %p394 = pneg %p242
        $region46: #{tpu_custom_call.1} parent=11 // pred_check_branch
          %396 = sbr.rel (%p394) target = $region48
        $region47: #{tpu_custom_call.1} parent=11 // pred_region
          _
        $region48: #{tpu_custom_call.1} parent=11 // pred_fallthru
          _
        // Predicated region
        $region49: #{tpu_custom_call.1} parent=11 // pred_check
          %p397 = pneg %p263
        $region50: #{tpu_custom_call.1} parent=11 // pred_check_branch
          %399 = sbr.rel (%p397) target = $region52
        $region51: #{tpu_custom_call.1} parent=11 // pred_region
          %401 = vsyncadd [#allocation15], 0
          %s402 = sshll.u32 %s10, 4
          %s403 = int_to_ptr.hbm [resolvable:$true] %s402
          %s404 = sshll.u32 [#allocation14], 4
          %s405 = int_to_ptr.vmem [resolvable:$true] %s404
          %410 = dma.hbm_to_vmem [thread:$0]  %s403, 256, %s405, [#allocation15], 128, 128, 8
        $region52: #{tpu_custom_call.1} parent=11 // pred_fallthru
          _
      $region12: #{tpu_custom_call.1} parent=5 // pred_fallthru
        _
      %p411 = scmp.lt.s32.totalorder %s27, 2
      // Predicated region
      $region53: #{tpu_custom_call.1} parent=5 // pred_check
        %p412 = pneg %p411
      $region54: #{tpu_custom_call.1} parent=5 // pred_check_branch
        %414 = sbr.rel (%p412) target = $region56
      $region55: #{tpu_custom_call.1} parent=5 // pred_region
        // Predicated region
        $region57: #{tpu_custom_call.1} parent=55 // pred_check
          %p415 = pneg %p47
        $region58: #{tpu_custom_call.1} parent=55 // pred_check_branch
          %417 = sbr.rel (%p415) target = $region60
        $region59: #{tpu_custom_call.1} parent=55 // pred_region
          %s418 = sand.u32 %s37, 1
          %s419 = scalar_lea.sflag [#allocation3], %s418
          %s420 = sand.u32 %s37, 1
          %s421 = smul.addr %s420, 8
          %s422 = scalar_lea.vmem [#allocation2], %s421
          %s423 = smul.u32 2, %s27
          %425 = vsyncadd %s419, 0
          %s426 = smul.addr %s423, 4
          %s427 = scalar_lea.hbm %s0, %s426
          %s429 = sshll.u32 %s427, 4
          %s430 = int_to_ptr.hbm [resolvable:$true] %s429
          %s431 = sshll.u32 %s422, 4
          %s432 = int_to_ptr.vmem [resolvable:$true] %s431
          %434 = dma.hbm_to_vmem [thread:$0]  %s430, 128, %s432, %s419
        $region60: #{tpu_custom_call.1} parent=55 // pred_fallthru
          _
      $region56: #{tpu_custom_call.1} parent=5 // pred_fallthru
        _
      %p435 = scmp.le.s32.totalorder 1, %s27
      %p436 = scmp.lt.s32.totalorder %s27, 3
      %p437 = pnand %p435, %p436
      %p438 = pneg %p437
      // Predicated region
      $region61: #{tpu_custom_call.1} parent=5 // pred_check
        _
      $region62: #{tpu_custom_call.1} parent=5 // pred_check_branch
        %440 = sbr.rel (%p437) target = $region64
      $region63: #{tpu_custom_call.1} parent=5 // pred_region
        %s441 = ssub.s32 %s27, 1
        %s442 = sand.u32 %s40, 1
        %s443 = scalar_lea.sflag [#allocation3], %s442
        %s444 = sand.u32 %s40, 1
        %s445 = smul.addr %s444, 8
        %s446 = scalar_lea.vmem [#allocation2], %s445
        // Predicated region
        $region65: #{tpu_custom_call.1} parent=63 // pred_check
          %p447 = pneg %p53
        $region66: #{tpu_custom_call.1} parent=63 // pred_check_branch
          %449 = sbr.rel (%p447) target = $region68
        $region67: #{tpu_custom_call.1} parent=63 // pred_region
          %451 = dma.done %s443, 128
        $region68: #{tpu_custom_call.1} parent=63 // pred_fallthru
          _
        // Predicated region
        $region69: #{tpu_custom_call.1} parent=63 // pred_check
          %p452 = pneg %p116
        $region70: #{tpu_custom_call.1} parent=63 // pred_check_branch
          %454 = sbr.rel (%p452) target = $region72
        $region71: #{tpu_custom_call.1} parent=63 // pred_region
          %456 = dma.done [#allocation6], 512
        $region72: #{tpu_custom_call.1} parent=63 // pred_fallthru
          _
        // Predicated region
        $region73: #{tpu_custom_call.1} parent=63 // pred_check
          %p457 = pneg %p137
        $region74: #{tpu_custom_call.1} parent=63 // pred_check_branch
          %459 = sbr.rel (%p457) target = $region76
        $region75: #{tpu_custom_call.1} parent=63 // pred_region
          %461 = dma.done [#allocation6], 1024
        $region76: #{tpu_custom_call.1} parent=63 // pred_fallthru
          _
        // Predicated region
        $region77: #{tpu_custom_call.1} parent=63 // pred_check
          %p462 = pneg %p158
        $region78: #{tpu_custom_call.1} parent=63 // pred_check_branch
          %464 = sbr.rel (%p462) target = $region80
        $region79: #{tpu_custom_call.1} parent=63 // pred_region
          %466 = dma.done [#allocation9], 512
        $region80: #{tpu_custom_call.1} parent=63 // pred_fallthru
          _
        // Predicated region
        $region81: #{tpu_custom_call.1} parent=63 // pred_check
          %p467 = pneg %p179
        $region82: #{tpu_custom_call.1} parent=63 // pred_check_branch
          %469 = sbr.rel (%p467) target = $region84
        $region83: #{tpu_custom_call.1} parent=63 // pred_region
          %471 = dma.done [#allocation9], 1024
        $region84: #{tpu_custom_call.1} parent=63 // pred_fallthru
          _
        // Predicated region
        $region85: #{tpu_custom_call.1} parent=63 // pred_check
          %p472 = pneg %p200
        $region86: #{tpu_custom_call.1} parent=63 // pred_check_branch
          %474 = sbr.rel (%p472) target = $region88
        $region87: #{tpu_custom_call.1} parent=63 // pred_region
          %476 = dma.done [#allocation12], 512
        $region88: #{tpu_custom_call.1} parent=63 // pred_fallthru
          _
        // Predicated region
        $region89: #{tpu_custom_call.1} parent=63 // pred_check
          %p477 = pneg %p221
        $region90: #{tpu_custom_call.1} parent=63 // pred_check_branch
          %479 = sbr.rel (%p477) target = $region92
        $region91: #{tpu_custom_call.1} parent=63 // pred_region
          %481 = dma.done [#allocation12], 1024
        $region92: #{tpu_custom_call.1} parent=63 // pred_fallthru
          _
        // Predicated region
        $region93: #{tpu_custom_call.1} parent=63 // pred_check
          %p482 = pneg %p263
        $region94: #{tpu_custom_call.1} parent=63 // pred_check_branch
          %484 = sbr.rel (%p482) target = $region96
        $region95: #{tpu_custom_call.1} parent=63 // pred_region
          %486 = dma.done [#allocation15], 256
        $region96: #{tpu_custom_call.1} parent=63 // pred_fallthru
          _
        %s487 = sand.u32 %s40, 1
        %s488 = scalar_lea.sflag [#allocation3], %s487
        %s489 = sand.u32 %s40, 1
        %s490 = smul.addr %s489, 8
        %s491 = scalar_lea.vmem [#allocation2], %s490
        %p492 = pneg %p53
        %p493 = pneg %p50
        %p494 = pneg %p74
        %p495 = pneg %p71
        %p496 = pneg %p95
        %p497 = pneg %p92
        %p498 = pneg %p116
        %p499 = pneg %p113
        %p500 = pneg %p137
        %p501 = pneg %p134
        %p502 = pneg %p158
        %p503 = pneg %p155
        %p504 = pneg %p179
        %p505 = pneg %p176
        %p506 = pneg %p200
        %p507 = pneg %p197
        %p508 = pneg %p221
        %p509 = pneg %p218
        %p510 = pneg %p242
        %p511 = pneg %p239
        %p512 = pneg %p263
        %p513 = pneg %p260
        %p514 = pneg %p289
        %p515 = pneg %p286
        %s516 = sand.u32 %s276, 1
        %s517 = scalar_lea.sflag [#allocation4], %s516
        %s518 = sand.u32 %s276, 1
        %s519 = smul.addr %s518, 32
        %s520 = scalar_lea.vmem [#allocation16], %s519
        %s521 = smul.u32 2, %s32
        %s522 = smul.u32 2, %s32
        %v524 = vld [vmem:[%s446] sm:$0xff]
        %v525 = vld [vmem:[%s1] sm:$0xff]
        %v526 = vld [vmem:[%s1 + $0x8] sm:$0xff]
        %v527 = vld [vmem:[%s1 + $0x10] sm:$0xff]
        %v528 = vld [vmem:[%s1 + $0x18] sm:$0xff]
        %v529 = vld [vmem:[%s1 + $0x20] sm:$0xff]
        %v530 = vld [vmem:[%s1 + $0x28] sm:$0xff]
        %v531 = vld [vmem:[%s1 + $0x30] sm:$0xff]
        %v532 = vld [vmem:[%s1 + $0x38] sm:$0xff]
        %534 = vset.pattern.permute.xlu0 0
        %535 = vperm.xlu0 %534, %v525
        %v536 = vpop.permute.xlu0 %535
        %539 = vset.pattern.permute.xlu0 0
        %540 = vperm.xlu0 %539, %v526
        %v541 = vpop.permute.xlu0 %540
        %544 = vset.pattern.permute.xlu0 0
        %545 = vperm.xlu0 %544, %v527
        %v546 = vpop.permute.xlu0 %545
        %549 = vset.pattern.permute.xlu0 0
        %550 = vperm.xlu0 %549, %v528
        %v551 = vpop.permute.xlu0 %550
        %554 = vset.pattern.permute.xlu0 0
        %555 = vperm.xlu0 %554, %v529
        %v556 = vpop.permute.xlu0 %555
        %559 = vset.pattern.permute.xlu0 0
        %560 = vperm.xlu0 %559, %v530
        %v561 = vpop.permute.xlu0 %560
        %564 = vset.pattern.permute.xlu0 0
        %565 = vperm.xlu0 %564, %v531
        %v566 = vpop.permute.xlu0 %565
        %569 = vset.pattern.permute.xlu0 0
        %570 = vperm.xlu0 %569, %v532
        %v571 = vpop.permute.xlu0 %570
        %v574 = vperm.slane %v524, 0
        %v575 = vperm.slane %v524, 4
        %v578 = vperm.slane %v574, 0
        %v579 = vperm.slane %v575, 0
        %v580 = vmul.f32 %v536, %v578
        %v581 = vmul.f32 %v536, %v579
        %v582 = vmul.f32 %v541, %v578
        %v583 = vmul.f32 %v541, %v579
        %v584 = vmul.f32 %v546, %v578
        %v585 = vmul.f32 %v546, %v579
        %v586 = vmul.f32 %v551, %v578
        %v587 = vmul.f32 %v551, %v579
        %v588 = vmul.f32 %v556, %v578
        %v589 = vmul.f32 %v556, %v579
        %v590 = vmul.f32 %v561, %v578
        %v591 = vmul.f32 %v561, %v579
        %v592 = vmul.f32 %v566, %v578
        %v593 = vmul.f32 %v566, %v579
        %v594 = vmul.f32 %v571, %v578
        %v595 = vmul.f32 %v571, %v579
        %596 = vset.pattern.permute.xlu0 1
        %597 = vperm.xlu0 %596, %v525
        %v598 = vpop.permute.xlu0 %597
        %600 = vset.pattern.permute.xlu0 1
        %601 = vperm.xlu0 %600, %v526
        %v602 = vpop.permute.xlu0 %601
        %604 = vset.pattern.permute.xlu0 1
        %605 = vperm.xlu0 %604, %v527
        %v606 = vpop.permute.xlu0 %605
        %608 = vset.pattern.permute.xlu0 1
        %609 = vperm.xlu0 %608, %v528
        %v610 = vpop.permute.xlu0 %609
        %612 = vset.pattern.permute.xlu0 1
        %613 = vperm.xlu0 %612, %v529
        %v614 = vpop.permute.xlu0 %613
        %616 = vset.pattern.permute.xlu0 1
        %617 = vperm.xlu0 %616, %v530
        %v618 = vpop.permute.xlu0 %617
        %620 = vset.pattern.permute.xlu0 1
        %621 = vperm.xlu0 %620, %v531
        %v622 = vpop.permute.xlu0 %621
        %624 = vset.pattern.permute.xlu0 1
        %625 = vperm.xlu0 %624, %v532
        %v626 = vpop.permute.xlu0 %625
        %v628 = vperm.slane %v524, 1
        %v629 = vperm.slane %v524, 5
        %v632 = vperm.slane %v628, 1
        %v633 = vperm.slane %v629, 1
        %v634 = vmul.f32 %v598, %v632
        %v635 = vmul.f32 %v598, %v633
        %v636 = vmul.f32 %v602, %v632
        %v637 = vmul.f32 %v602, %v633
        %v638 = vmul.f32 %v606, %v632
        %v639 = vmul.f32 %v606, %v633
        %v640 = vmul.f32 %v610, %v632
        %v641 = vmul.f32 %v610, %v633
        %v642 = vmul.f32 %v614, %v632
        %v643 = vmul.f32 %v614, %v633
        %v644 = vmul.f32 %v618, %v632
        %v645 = vmul.f32 %v618, %v633
        %v646 = vmul.f32 %v622, %v632
        %v647 = vmul.f32 %v622, %v633
        %v648 = vmul.f32 %v626, %v632
        %v649 = vmul.f32 %v626, %v633
        %v650 = vadd.f32 %v580, %v634
        %v651 = vadd.f32 %v581, %v635
        %v652 = vadd.f32 %v582, %v636
        %v653 = vadd.f32 %v583, %v637
        %v654 = vadd.f32 %v584, %v638
        %v655 = vadd.f32 %v585, %v639
        %v656 = vadd.f32 %v586, %v640
        %v657 = vadd.f32 %v587, %v641
        %v658 = vadd.f32 %v588, %v642
        %v659 = vadd.f32 %v589, %v643
        %v660 = vadd.f32 %v590, %v644
        %v661 = vadd.f32 %v591, %v645
        %v662 = vadd.f32 %v592, %v646
        %v663 = vadd.f32 %v593, %v647
        %v664 = vadd.f32 %v594, %v648
        %v665 = vadd.f32 %v595, %v649
        %666 = vset.pattern.permute.xlu0 2
        %667 = vperm.xlu0 %666, %v525
        %v668 = vpop.permute.xlu0 %667
        %670 = vset.pattern.permute.xlu0 2
        %671 = vperm.xlu0 %670, %v526
        %v672 = vpop.permute.xlu0 %671
        %674 = vset.pattern.permute.xlu0 2
        %675 = vperm.xlu0 %674, %v527
        %v676 = vpop.permute.xlu0 %675
        %678 = vset.pattern.permute.xlu0 2
        %679 = vperm.xlu0 %678, %v528
        %v680 = vpop.permute.xlu0 %679
        %682 = vset.pattern.permute.xlu0 2
        %683 = vperm.xlu0 %682, %v529
        %v684 = vpop.permute.xlu0 %683
        %686 = vset.pattern.permute.xlu0 2
        %687 = vperm.xlu0 %686, %v530
        %v688 = vpop.permute.xlu0 %687
        %690 = vset.pattern.permute.xlu0 2
        %691 = vperm.xlu0 %690, %v531
        %v692 = vpop.permute.xlu0 %691
        %694 = vset.pattern.permute.xlu0 2
        %695 = vperm.xlu0 %694, %v532
        %v696 = vpop.permute.xlu0 %695
        %v698 = vperm.slane %v524, 2
        %v699 = vperm.slane %v524, 6
        %v702 = vperm.slane %v698, 2
        %v703 = vperm.slane %v699, 2
        %v704 = vmul.f32 %v668, %v702
        %v705 = vmul.f32 %v668, %v703
        %v706 = vmul.f32 %v672, %v702
        %v707 = vmul.f32 %v672, %v703
        %v708 = vmul.f32 %v676, %v702
        %v709 = vmul.f32 %v676, %v703
        %v710 = vmul.f32 %v680, %v702
        %v711 = vmul.f32 %v680, %v703
        %v712 = vmul.f32 %v684, %v702
        %v713 = vmul.f32 %v684, %v703
        %v714 = vmul.f32 %v688, %v702
        %v715 = vmul.f32 %v688, %v703
        %v716 = vmul.f32 %v692, %v702
        %v717 = vmul.f32 %v692, %v703
        %v718 = vmul.f32 %v696, %v702
        %v719 = vmul.f32 %v696, %v703
        %v720 = vadd.f32 %v650, %v704
        %v721 = vadd.f32 %v651, %v705
        %v722 = vadd.f32 %v652, %v706
        %v723 = vadd.f32 %v653, %v707
        %v724 = vadd.f32 %v654, %v708
        %v725 = vadd.f32 %v655, %v709
        %v726 = vadd.f32 %v656, %v710
        %v727 = vadd.f32 %v657, %v711
        %v728 = vadd.f32 %v658, %v712
        %v729 = vadd.f32 %v659, %v713
        %v730 = vadd.f32 %v660, %v714
        %v731 = vadd.f32 %v661, %v715
        %v732 = vadd.f32 %v662, %v716
        %v733 = vadd.f32 %v663, %v717
        %v734 = vadd.f32 %v664, %v718
        %v735 = vadd.f32 %v665, %v719
        %736 = vset.pattern.permute.xlu0 3
        %737 = vperm.xlu0 %736, %v525
        %v738 = vpop.permute.xlu0 %737
        %740 = vset.pattern.permute.xlu0 3
        %741 = vperm.xlu0 %740, %v526
        %v742 = vpop.permute.xlu0 %741
        %744 = vset.pattern.permute.xlu0 3
        %745 = vperm.xlu0 %744, %v527
        %v746 = vpop.permute.xlu0 %745
        %748 = vset.pattern.permute.xlu0 3
        %749 = vperm.xlu0 %748, %v528
        %v750 = vpop.permute.xlu0 %749
        %752 = vset.pattern.permute.xlu0 3
        %753 = vperm.xlu0 %752, %v529
        %v754 = vpop.permute.xlu0 %753
        %756 = vset.pattern.permute.xlu0 3
        %757 = vperm.xlu0 %756, %v530
        %v758 = vpop.permute.xlu0 %757
        %760 = vset.pattern.permute.xlu0 3
        %761 = vperm.xlu0 %760, %v531
        %v762 = vpop.permute.xlu0 %761
        %764 = vset.pattern.permute.xlu0 3
        %765 = vperm.xlu0 %764, %v532
        %v766 = vpop.permute.xlu0 %765
        %v768 = vperm.slane %v524, 3
        %v769 = vperm.slane %v524, 7
        %v772 = vperm.slane %v768, 3
        %v773 = vperm.slane %v769, 3
        %v774 = vmul.f32 %v738, %v772
        %v775 = vmul.f32 %v738, %v773
        %v776 = vmul.f32 %v742, %v772
        %v777 = vmul.f32 %v742, %v773
        %v778 = vmul.f32 %v746, %v772
        %v779 = vmul.f32 %v746, %v773
        %v780 = vmul.f32 %v750, %v772
        %v781 = vmul.f32 %v750, %v773
        %v782 = vmul.f32 %v754, %v772
        %v783 = vmul.f32 %v754, %v773
        %v784 = vmul.f32 %v758, %v772
        %v785 = vmul.f32 %v758, %v773
        %v786 = vmul.f32 %v762, %v772
        %v787 = vmul.f32 %v762, %v773
        %v788 = vmul.f32 %v766, %v772
        %v789 = vmul.f32 %v766, %v773
        %v790 = vadd.f32 %v720, %v774
        %v791 = vadd.f32 %v721, %v775
        %v792 = vadd.f32 %v722, %v776
        %v793 = vadd.f32 %v723, %v777
        %v794 = vadd.f32 %v724, %v778
        %v795 = vadd.f32 %v725, %v779
        %v796 = vadd.f32 %v726, %v780
        %v797 = vadd.f32 %v727, %v781
        %v798 = vadd.f32 %v728, %v782
        %v799 = vadd.f32 %v729, %v783
        %v800 = vadd.f32 %v730, %v784
        %v801 = vadd.f32 %v731, %v785
        %v802 = vadd.f32 %v732, %v786
        %v803 = vadd.f32 %v733, %v787
        %v804 = vadd.f32 %v734, %v788
        %v805 = vadd.f32 %v735, %v789
        %v806 = vld [vmem:[%s2] sm:$0xff]
        %v807 = vld [vmem:[%s2 + $0x8] sm:$0xff]
        %v808 = vld [vmem:[%s2 + $0x10] sm:$0xff]
        %v809 = vld [vmem:[%s2 + $0x18] sm:$0xff]
        %v810 = vld [vmem:[%s2 + $0x20] sm:$0xff]
        %v811 = vld [vmem:[%s2 + $0x28] sm:$0xff]
        %v812 = vld [vmem:[%s2 + $0x30] sm:$0xff]
        %v813 = vld [vmem:[%s2 + $0x38] sm:$0xff]
        %v814 = vadd.f32 %v790, %v806
        %v815 = vadd.f32 %v791, %v806
        %v816 = vadd.f32 %v792, %v807
        %v817 = vadd.f32 %v793, %v807
        %v818 = vadd.f32 %v794, %v808
        %v819 = vadd.f32 %v795, %v808
        %v820 = vadd.f32 %v796, %v809
        %v821 = vadd.f32 %v797, %v809
        %v822 = vadd.f32 %v798, %v810
        %v823 = vadd.f32 %v799, %v810
        %v824 = vadd.f32 %v800, %v811
        %v825 = vadd.f32 %v801, %v811
        %v826 = vadd.f32 %v802, %v812
        %v827 = vadd.f32 %v803, %v812
        %v828 = vadd.f32 %v804, %v813
        %v829 = vadd.f32 %v805, %v813
        %v830 = vtanh.pop %v814
        %v831 = vtanh.pop %v815
        %v832 = vtanh.pop %v816
        %v833 = vtanh.pop %v817
        %v834 = vtanh.pop %v818
        %v835 = vtanh.pop %v819
        %v836 = vtanh.pop %v820
        %v837 = vtanh.pop %v821
        %v838 = vtanh.pop %v822
        %v839 = vtanh.pop %v823
        %v840 = vtanh.pop %v824
        %v841 = vtanh.pop %v825
        %v842 = vtanh.pop %v826
        %v843 = vtanh.pop %v827
        %v844 = vtanh.pop %v828
        %v845 = vtanh.pop %v829
        %v846 = vpack.c.bf16 %v832, %v830
        %v847 = vpack.c.bf16 %v833, %v831
        %v848 = vpack.c.bf16 %v836, %v834
        %v849 = vpack.c.bf16 %v837, %v835
        %v850 = vpack.c.bf16 %v840, %v838
        %v851 = vpack.c.bf16 %v841, %v839
        %v852 = vpack.c.bf16 %v844, %v842
        %v853 = vpack.c.bf16 %v845, %v843
        %v854 = vld [vmem:[#allocation5] sm:$0xf]
        %v855 = vld [vmem:[#allocation5 + $0x4] sm:$0xf]
        %v856 = vld [vmem:[#allocation5 + $0x8] sm:$0xf]
        %v857 = vld [vmem:[#allocation5 + $0xc] sm:$0xf]
        %v858 = vld [vmem:[#allocation5 + $0x10] sm:$0xf]
        %v859 = vld [vmem:[#allocation5 + $0x14] sm:$0xf]
        %v860 = vld [vmem:[#allocation5 + $0x18] sm:$0xf]
        %v861 = vld [vmem:[#allocation5 + $0x1c] sm:$0xf]
        %v862 = vld [vmem:[#allocation7] sm:$0xff]
        %v863 = vld [vmem:[#allocation7 + $0x8] sm:$0xff]
        %v864 = vld [vmem:[#allocation7 + $0x10] sm:$0xff]
        %v865 = vld [vmem:[#allocation7 + $0x18] sm:$0xff]
        %v866 = vld [vmem:[#allocation7 + $0x20] sm:$0xff]
        %v867 = vld [vmem:[#allocation7 + $0x28] sm:$0xff]
        %v868 = vld [vmem:[#allocation7 + $0x30] sm:$0xff]
        %v869 = vld [vmem:[#allocation7 + $0x38] sm:$0xff]
        %v878 = vunpack.c.l.b16 %v854
        %v879 = vunpack.c.l.b16 %v855
        %v880 = vunpack.c.l.b16 %v856
        %v881 = vunpack.c.l.b16 %v857
        %v882 = vunpack.c.l.b16 %v858
        %v883 = vunpack.c.l.b16 %v859
        %v884 = vunpack.c.l.b16 %v860
        %v885 = vunpack.c.l.b16 %v861
        %v886 = vpack.c.b16 %v879, %v878
        %v887 = vpack.c.b16 %v881, %v880
        %v888 = vpack.c.b16 %v883, %v882
        %v889 = vpack.c.b16 %v885, %v884
        %vm890 = vcmask 523264
        %v892 = vsel %vm890, %v886, 0
        %v895 = vsel %vm890, %v887, 0
        %v898 = vsel %vm890, %v888, 0
        %v901 = vsel %vm890, %v889, 0
        %903 = vmatpush.bf16.msra.mxu0 0
        %904 = vmatpush.bf16.msra.mxu0 0
        %905 = vmatpush.bf16.msra.mxu0 0
        %906 = vmatpush.bf16.msra.mxu0 0
        %907 = vmatpush.bf16.msra.mxu0 %v852
        %908 = vmatpush.bf16.msra.mxu0 %v850
        %909 = vmatpush.bf16.msra.mxu0 %v848
        %910 = vmatpush.bf16.msra.mxu0 %v846
        %911 = vmatmul.bf16.gmra.mxu0 %v892
        %v912 = vpop.f32.mrf.mxu0
        %v913 = vadd.f32 %v862, %v912
        %v914 = vpop.f32.mrf.mxu0
        %v915 = vadd.f32 %v863, %v914
        %916 = vmatmul.bf16.gmra.mxu0 %v895
        %v917 = vpop.f32.mrf.mxu0
        %v918 = vadd.f32 %v864, %v917
        %v919 = vpop.f32.mrf.mxu0
        %v920 = vadd.f32 %v865, %v919
        %921 = vmatmul.bf16.gmra.mxu0 %v898
        %v922 = vpop.f32.mrf.mxu0
        %v923 = vadd.f32 %v866, %v922
        %v924 = vpop.f32.mrf.mxu0
        %v925 = vadd.f32 %v867, %v924
        %926 = vmatmul.bf16.gmra.mxu0 %v901
        %v927 = vpop.f32.mrf.mxu0
        %v928 = vadd.f32 %v868, %v927
        %v929 = vpop.f32.mrf.mxu0
        %v930 = vadd.f32 %v869, %v929
        %931 = vdwg.mxu0
        %932 = vmatpush.bf16.msra.mxu0 0
        %933 = vmatpush.bf16.msra.mxu0 0
        %934 = vmatpush.bf16.msra.mxu0 0
        %935 = vmatpush.bf16.msra.mxu0 0
        %936 = vmatpush.bf16.msra.mxu0 %v853
        %937 = vmatpush.bf16.msra.mxu0 %v851
        %938 = vmatpush.bf16.msra.mxu0 %v849
        %939 = vmatpush.bf16.msra.mxu0 %v847
        %940 = vmatmul.bf16.gmra.mxu0 %v892
        %v941 = vpop.f32.mrf.mxu0
        %v942 = vadd.f32 %v862, %v941
        %v943 = vpop.f32.mrf.mxu0
        %v944 = vadd.f32 %v863, %v943
        %945 = vmatmul.bf16.gmra.mxu0 %v895
        %v946 = vpop.f32.mrf.mxu0
        %v947 = vadd.f32 %v864, %v946
        %v948 = vpop.f32.mrf.mxu0
        %v949 = vadd.f32 %v865, %v948
        %950 = vmatmul.bf16.gmra.mxu0 %v898
        %v951 = vpop.f32.mrf.mxu0
        %v952 = vadd.f32 %v866, %v951
        %v953 = vpop.f32.mrf.mxu0
        %v954 = vadd.f32 %v867, %v953
        %955 = vmatmul.bf16.gmra.mxu0 %v901
        %v956 = vpop.f32.mrf.mxu0
        %v957 = vadd.f32 %v868, %v956
        %v958 = vpop.f32.mrf.mxu0
        %v959 = vadd.f32 %v869, %v958
        %960 = vdwg.mxu0
        %v961 = vtanh.pop %v913
        %v962 = vtanh.pop %v942
        %v963 = vtanh.pop %v915
        %v964 = vtanh.pop %v944
        %v965 = vtanh.pop %v918
        %v966 = vtanh.pop %v947
        %v967 = vtanh.pop %v920
        %v968 = vtanh.pop %v949
        %v969 = vtanh.pop %v923
        %v970 = vtanh.pop %v952
        %v971 = vtanh.pop %v925
        %v972 = vtanh.pop %v954
        %v973 = vtanh.pop %v928
        %v974 = vtanh.pop %v957
        %v975 = vtanh.pop %v930
        %v976 = vtanh.pop %v959
        %v977 = vpack.c.bf16 %v963, %v961
        %v978 = vpack.c.bf16 %v964, %v962
        %v979 = vpack.c.bf16 %v967, %v965
        %v980 = vpack.c.bf16 %v968, %v966
        %v981 = vpack.c.bf16 %v971, %v969
        %v982 = vpack.c.bf16 %v972, %v970
        %v983 = vpack.c.bf16 %v975, %v973
        %v984 = vpack.c.bf16 %v976, %v974
        %v985 = vld [vmem:[#allocation8] sm:$0xf]
        %v986 = vld [vmem:[#allocation8 + $0x4] sm:$0xf]
        %v987 = vld [vmem:[#allocation8 + $0x8] sm:$0xf]
        %v988 = vld [vmem:[#allocation8 + $0xc] sm:$0xf]
        %v989 = vld [vmem:[#allocation8 + $0x10] sm:$0xf]
        %v990 = vld [vmem:[#allocation8 + $0x14] sm:$0xf]
        %v991 = vld [vmem:[#allocation8 + $0x18] sm:$0xf]
        %v992 = vld [vmem:[#allocation8 + $0x1c] sm:$0xf]
        %v993 = vld [vmem:[#allocation10] sm:$0xff]
        %v994 = vld [vmem:[#allocation10 + $0x8] sm:$0xff]
        %v995 = vld [vmem:[#allocation10 + $0x10] sm:$0xff]
        %v996 = vld [vmem:[#allocation10 + $0x18] sm:$0xff]
        %v997 = vld [vmem:[#allocation10 + $0x20] sm:$0xff]
        %v998 = vld [vmem:[#allocation10 + $0x28] sm:$0xff]
        %v999 = vld [vmem:[#allocation10 + $0x30] sm:$0xff]
        %v1000 = vld [vmem:[#allocation10 + $0x38] sm:$0xff]
        %v1009 = vunpack.c.l.b16 %v985
        %v1010 = vunpack.c.l.b16 %v986
        %v1011 = vunpack.c.l.b16 %v987
        %v1012 = vunpack.c.l.b16 %v988
        %v1013 = vunpack.c.l.b16 %v989
        %v1014 = vunpack.c.l.b16 %v990
        %v1015 = vunpack.c.l.b16 %v991
        %v1016 = vunpack.c.l.b16 %v992
        %v1017 = vpack.c.b16 %v1010, %v1009
        %v1018 = vpack.c.b16 %v1012, %v1011
        %v1019 = vpack.c.b16 %v1014, %v1013
        %v1020 = vpack.c.b16 %v1016, %v1015
        %v1022 = vsel %vm890, %v1017, 0
        %v1025 = vsel %vm890, %v1018, 0
        %v1028 = vsel %vm890, %v1019, 0
        %v1031 = vsel %vm890, %v1020, 0
        %1033 = vmatpush.bf16.msra.mxu0 0
        %1034 = vmatpush.bf16.msra.mxu0 0
        %1035 = vmatpush.bf16.msra.mxu0 0
        %1036 = vmatpush.bf16.msra.mxu0 0
        %1037 = vmatpush.bf16.msra.mxu0 %v983
        %1038 = vmatpush.bf16.msra.mxu0 %v981
        %1039 = vmatpush.bf16.msra.mxu0 %v979
        %1040 = vmatpush.bf16.msra.mxu0 %v977
        %1041 = vmatmul.bf16.gmra.mxu0 %v1022
        %v1042 = vpop.f32.mrf.mxu0
        %v1043 = vadd.f32 %v993, %v1042
        %v1044 = vpop.f32.mrf.mxu0
        %v1045 = vadd.f32 %v994, %v1044
        %1046 = vmatmul.bf16.gmra.mxu0 %v1025
        %v1047 = vpop.f32.mrf.mxu0
        %v1048 = vadd.f32 %v995, %v1047
        %v1049 = vpop.f32.mrf.mxu0
        %v1050 = vadd.f32 %v996, %v1049
        %1051 = vmatmul.bf16.gmra.mxu0 %v1028
        %v1052 = vpop.f32.mrf.mxu0
        %v1053 = vadd.f32 %v997, %v1052
        %v1054 = vpop.f32.mrf.mxu0
        %v1055 = vadd.f32 %v998, %v1054
        %1056 = vmatmul.bf16.gmra.mxu0 %v1031
        %v1057 = vpop.f32.mrf.mxu0
        %v1058 = vadd.f32 %v999, %v1057
        %v1059 = vpop.f32.mrf.mxu0
        %v1060 = vadd.f32 %v1000, %v1059
        %1061 = vdwg.mxu0
        %1062 = vmatpush.bf16.msra.mxu0 0
        %1063 = vmatpush.bf16.msra.mxu0 0
        %1064 = vmatpush.bf16.msra.mxu0 0
        %1065 = vmatpush.bf16.msra.mxu0 0
        %1066 = vmatpush.bf16.msra.mxu0 %v984
        %1067 = vmatpush.bf16.msra.mxu0 %v982
        %1068 = vmatpush.bf16.msra.mxu0 %v980
        %1069 = vmatpush.bf16.msra.mxu0 %v978
        %1070 = vmatmul.bf16.gmra.mxu0 %v1022
        %v1071 = vpop.f32.mrf.mxu0
        %v1072 = vadd.f32 %v993, %v1071
        %v1073 = vpop.f32.mrf.mxu0
        %v1074 = vadd.f32 %v994, %v1073
        %1075 = vmatmul.bf16.gmra.mxu0 %v1025
        %v1076 = vpop.f32.mrf.mxu0
        %v1077 = vadd.f32 %v995, %v1076
        %v1078 = vpop.f32.mrf.mxu0
        %v1079 = vadd.f32 %v996, %v1078
        %1080 = vmatmul.bf16.gmra.mxu0 %v1028
        %v1081 = vpop.f32.mrf.mxu0
        %v1082 = vadd.f32 %v997, %v1081
        %v1083 = vpop.f32.mrf.mxu0
        %v1084 = vadd.f32 %v998, %v1083
        %1085 = vmatmul.bf16.gmra.mxu0 %v1031
        %v1086 = vpop.f32.mrf.mxu0
        %v1087 = vadd.f32 %v999, %v1086
        %v1088 = vpop.f32.mrf.mxu0
        %v1089 = vadd.f32 %v1000, %v1088
        %1090 = vdwg.mxu0
        %v1091 = vtanh.pop %v1043
        %v1092 = vtanh.pop %v1072
        %v1093 = vtanh.pop %v1045
        %v1094 = vtanh.pop %v1074
        %v1095 = vtanh.pop %v1048
        %v1096 = vtanh.pop %v1077
        %v1097 = vtanh.pop %v1050
        %v1098 = vtanh.pop %v1079
        %v1099 = vtanh.pop %v1053
        %v1100 = vtanh.pop %v1082
        %v1101 = vtanh.pop %v1055
        %v1102 = vtanh.pop %v1084
        %v1103 = vtanh.pop %v1058
        %v1104 = vtanh.pop %v1087
        %v1105 = vtanh.pop %v1060
        %v1106 = vtanh.pop %v1089
        %v1107 = vpack.c.bf16 %v1093, %v1091
        %v1108 = vpack.c.bf16 %v1094, %v1092
        %v1109 = vpack.c.bf16 %v1097, %v1095
        %v1110 = vpack.c.bf16 %v1098, %v1096
        %v1111 = vpack.c.bf16 %v1101, %v1099
        %v1112 = vpack.c.bf16 %v1102, %v1100
        %v1113 = vpack.c.bf16 %v1105, %v1103
        %v1114 = vpack.c.bf16 %v1106, %v1104
        %v1115 = vld [vmem:[#allocation11] sm:$0xf]
        %v1116 = vld [vmem:[#allocation11 + $0x4] sm:$0xf]
        %v1117 = vld [vmem:[#allocation11 + $0x8] sm:$0xf]
        %v1118 = vld [vmem:[#allocation11 + $0xc] sm:$0xf]
        %v1119 = vld [vmem:[#allocation11 + $0x10] sm:$0xf]
        %v1120 = vld [vmem:[#allocation11 + $0x14] sm:$0xf]
        %v1121 = vld [vmem:[#allocation11 + $0x18] sm:$0xf]
        %v1122 = vld [vmem:[#allocation11 + $0x1c] sm:$0xf]
        %v1123 = vld [vmem:[#allocation13] sm:$0xff]
        %v1124 = vld [vmem:[#allocation13 + $0x8] sm:$0xff]
        %v1125 = vld [vmem:[#allocation13 + $0x10] sm:$0xff]
        %v1126 = vld [vmem:[#allocation13 + $0x18] sm:$0xff]
        %v1127 = vld [vmem:[#allocation13 + $0x20] sm:$0xff]
        %v1128 = vld [vmem:[#allocation13 + $0x28] sm:$0xff]
        %v1129 = vld [vmem:[#allocation13 + $0x30] sm:$0xff]
        %v1130 = vld [vmem:[#allocation13 + $0x38] sm:$0xff]
        %v1139 = vunpack.c.l.b16 %v1115
        %v1140 = vunpack.c.l.b16 %v1116
        %v1141 = vunpack.c.l.b16 %v1117
        %v1142 = vunpack.c.l.b16 %v1118
        %v1143 = vunpack.c.l.b16 %v1119
        %v1144 = vunpack.c.l.b16 %v1120
        %v1145 = vunpack.c.l.b16 %v1121
        %v1146 = vunpack.c.l.b16 %v1122
        %v1147 = vpack.c.b16 %v1140, %v1139
        %v1148 = vpack.c.b16 %v1142, %v1141
        %v1149 = vpack.c.b16 %v1144, %v1143
        %v1150 = vpack.c.b16 %v1146, %v1145
        %v1152 = vsel %vm890, %v1147, 0
        %v1155 = vsel %vm890, %v1148, 0
        %v1158 = vsel %vm890, %v1149, 0
        %v1161 = vsel %vm890, %v1150, 0
        %1163 = vmatpush.bf16.msra.mxu0 0
        %1164 = vmatpush.bf16.msra.mxu0 0
        %1165 = vmatpush.bf16.msra.mxu0 0
        %1166 = vmatpush.bf16.msra.mxu0 0
        %1167 = vmatpush.bf16.msra.mxu0 %v1113
        %1168 = vmatpush.bf16.msra.mxu0 %v1111
        %1169 = vmatpush.bf16.msra.mxu0 %v1109
        %1170 = vmatpush.bf16.msra.mxu0 %v1107
        %1171 = vmatmul.bf16.gmra.mxu0 %v1152
        %v1172 = vpop.f32.mrf.mxu0
        %v1173 = vadd.f32 %v1123, %v1172
        %v1174 = vpop.f32.mrf.mxu0
        %v1175 = vadd.f32 %v1124, %v1174
        %1176 = vmatmul.bf16.gmra.mxu0 %v1155
        %v1177 = vpop.f32.mrf.mxu0
        %v1178 = vadd.f32 %v1125, %v1177
        %v1179 = vpop.f32.mrf.mxu0
        %v1180 = vadd.f32 %v1126, %v1179
        %1181 = vmatmul.bf16.gmra.mxu0 %v1158
        %v1182 = vpop.f32.mrf.mxu0
        %v1183 = vadd.f32 %v1127, %v1182
        %v1184 = vpop.f32.mrf.mxu0
        %v1185 = vadd.f32 %v1128, %v1184
        %1186 = vmatmul.bf16.gmra.mxu0 %v1161
        %v1187 = vpop.f32.mrf.mxu0
        %v1188 = vadd.f32 %v1129, %v1187
        %v1189 = vpop.f32.mrf.mxu0
        %v1190 = vadd.f32 %v1130, %v1189
        %1191 = vdwg.mxu0
        %1192 = vmatpush.bf16.msra.mxu0 0
        %1193 = vmatpush.bf16.msra.mxu0 0
        %1194 = vmatpush.bf16.msra.mxu0 0
        %1195 = vmatpush.bf16.msra.mxu0 0
        %1196 = vmatpush.bf16.msra.mxu0 %v1114
        %1197 = vmatpush.bf16.msra.mxu0 %v1112
        %1198 = vmatpush.bf16.msra.mxu0 %v1110
        %1199 = vmatpush.bf16.msra.mxu0 %v1108
        %1200 = vmatmul.bf16.gmra.mxu0 %v1152
        %v1201 = vpop.f32.mrf.mxu0
        %v1202 = vadd.f32 %v1123, %v1201
        %v1203 = vpop.f32.mrf.mxu0
        %v1204 = vadd.f32 %v1124, %v1203
        %1205 = vmatmul.bf16.gmra.mxu0 %v1155
        %v1206 = vpop.f32.mrf.mxu0
        %v1207 = vadd.f32 %v1125, %v1206
        %v1208 = vpop.f32.mrf.mxu0
        %v1209 = vadd.f32 %v1126, %v1208
        %1210 = vmatmul.bf16.gmra.mxu0 %v1158
        %v1211 = vpop.f32.mrf.mxu0
        %v1212 = vadd.f32 %v1127, %v1211
        %v1213 = vpop.f32.mrf.mxu0
        %v1214 = vadd.f32 %v1128, %v1213
        %1215 = vmatmul.bf16.gmra.mxu0 %v1161
        %v1216 = vpop.f32.mrf.mxu0
        %v1217 = vadd.f32 %v1129, %v1216
        %v1218 = vpop.f32.mrf.mxu0
        %v1219 = vadd.f32 %v1130, %v1218
        %1220 = vdwg.mxu0
        %v1221 = vtanh.pop %v1173
        %v1222 = vtanh.pop %v1202
        %v1223 = vtanh.pop %v1175
        %v1224 = vtanh.pop %v1204
        %v1225 = vtanh.pop %v1178
        %v1226 = vtanh.pop %v1207
        %v1227 = vtanh.pop %v1180
        %v1228 = vtanh.pop %v1209
        %v1229 = vtanh.pop %v1183
        %v1230 = vtanh.pop %v1212
        %v1231 = vtanh.pop %v1185
        %v1232 = vtanh.pop %v1214
        %v1233 = vtanh.pop %v1188
        %v1234 = vtanh.pop %v1217
        %v1235 = vtanh.pop %v1190
        %v1236 = vtanh.pop %v1219
        %v1237 = vpack.c.bf16 %v1223, %v1221
        %v1238 = vpack.c.bf16 %v1224, %v1222
        %v1239 = vpack.c.bf16 %v1227, %v1225
        %v1240 = vpack.c.bf16 %v1228, %v1226
        %v1241 = vpack.c.bf16 %v1231, %v1229
        %v1242 = vpack.c.bf16 %v1232, %v1230
        %v1243 = vpack.c.bf16 %v1235, %v1233
        %v1244 = vpack.c.bf16 %v1236, %v1234
        %v1245 = vld [vmem:[%s9] sm:$0xf]
        %v1246 = vld [vmem:[%s9 + $0x4] sm:$0xf]
        %v1247 = vld [vmem:[#allocation14] sm:$0xff]
        %v1248 = vld [vmem:[#allocation14 + $0x8] sm:$0xff]
        %v1251 = vunpack.c.l.b16 %v1245
        %v1252 = vunpack.c.l.b16 %v1246
        %v1253 = vpack.c.b16 %v1252, %v1251
        %v1255 = vsel %vm890, %v1253, 0
        %1257 = vmatpush.bf16.msra.mxu0 0
        %1258 = vmatpush.bf16.msra.mxu0 0
        %1259 = vmatpush.bf16.msra.mxu0 0
        %1260 = vmatpush.bf16.msra.mxu0 0
        %1261 = vmatpush.bf16.msra.mxu0 %v1243
        %1262 = vmatpush.bf16.msra.mxu0 %v1241
        %1263 = vmatpush.bf16.msra.mxu0 %v1239
        %1264 = vmatpush.bf16.msra.mxu0 %v1237
        %1265 = vmatmul.bf16.gmra.mxu0 %v1255
        %v1266 = vpop.f32.mrf.mxu0
        %v1267 = vadd.f32 %v1247, %v1266
        %v1268 = vpop.f32.mrf.mxu0
        %v1269 = vadd.f32 %v1248, %v1268
        %1270 = vdwg.mxu0
        %1271 = vmatpush.bf16.msra.mxu0 0
        %1272 = vmatpush.bf16.msra.mxu0 0
        %1273 = vmatpush.bf16.msra.mxu0 0
        %1274 = vmatpush.bf16.msra.mxu0 0
        %1275 = vmatpush.bf16.msra.mxu0 %v1244
        %1276 = vmatpush.bf16.msra.mxu0 %v1242
        %1277 = vmatpush.bf16.msra.mxu0 %v1240
        %1278 = vmatpush.bf16.msra.mxu0 %v1238
        %1279 = vmatmul.bf16.gmra.mxu0 %v1255
        %v1280 = vpop.f32.mrf.mxu0
        %v1281 = vadd.f32 %v1247, %v1280
        %v1282 = vpop.f32.mrf.mxu0
        %v1283 = vadd.f32 %v1248, %v1282
        %1284 = vdwg.mxu0
        %v1285 = vtanh.pop %v1267
        %v1286 = vtanh.pop %v1281
        %v1287 = vtanh.pop %v1269
        %v1288 = vtanh.pop %v1283
        %1289 = vst [vmem:[%s520] sm:$0xff] %v1285
        %1290 = vst [vmem:[%s520 + $0x8] sm:$0xff] %v1286
        %1291 = vst [vmem:[%s520 + $0x10] sm:$0xff] %v1287
        %1292 = vst [vmem:[%s520 + $0x18] sm:$0xff] %v1288
        %s1293 = sand.u32 %s276, 1
        %s1294 = scalar_lea.sflag [#allocation4], %s1293
        %s1295 = sand.u32 %s276, 1
        %s1296 = smul.addr %s1295, 32
        %s1297 = scalar_lea.vmem [#allocation16], %s1296
        // Predicated region
        $region97: #{tpu_custom_call.1} parent=63 // pred_check
          %p1298 = pneg %p286
        $region98: #{tpu_custom_call.1} parent=63 // pred_check_branch
          %1300 = sbr.rel (%p1298) target = $region100
        $region99: #{tpu_custom_call.1} parent=63 // pred_region
          %s1301 = smul.u32 2, %s32
          %1303 = vsyncadd %s1294, 0
          %s1304 = smul.addr %s1301, 8
          %s1305 = scalar_lea.hbm %s11, %s1304
          %s1306 = sshll.u32 %s1297, 4
          %s1307 = int_to_ptr.vmem [resolvable:$true] %s1306
          %s1308 = sshll.u32 %s1305, 4
          %s1309 = int_to_ptr.hbm [resolvable:$true] %s1308
          %1314 = dma.vmem_to_hbm [thread:$0]  %s1307, 512, %s1309, %s1294, 256, 512, 16
        $region100: #{tpu_custom_call.1} parent=63 // pred_fallthru
          _
      $region64: #{tpu_custom_call.1} parent=5 // pred_fallthru
        _
      %p1315 = scmp.le.s32.totalorder 2, %s27
      // Predicated region
      $region101: #{tpu_custom_call.1} parent=5 // pred_check
        %p1316 = pneg %p1315
      $region102: #{tpu_custom_call.1} parent=5 // pred_check_branch
        %1318 = sbr.rel (%p1316) target = $region104
      $region103: #{tpu_custom_call.1} parent=5 // pred_region
        %s1319 = ssub.s32 %s27, 2
        // Predicated region
        $region105: #{tpu_custom_call.1} parent=103 // pred_check
          %p1320 = pneg %p292
        $region106: #{tpu_custom_call.1} parent=103 // pred_check_branch
          %1322 = sbr.rel (%p1320) target = $region108
        $region107: #{tpu_custom_call.1} parent=103 // pred_region
          %s1323 = sand.u32 %s277, 1
          %s1324 = scalar_lea.sflag [#allocation4], %s1323
          %s1325 = sand.u32 %s277, 1
          %s1326 = smul.addr %s1325, 32
          %s1327 = scalar_lea.vmem [#allocation16], %s1326
          %1329 = dma.done %s1324, 512
        $region108: #{tpu_custom_call.1} parent=103 // pred_fallthru
          _
      $region104: #{tpu_custom_call.1} parent=5 // pred_fallthru
        _
    $region6: #{tpu_custom_call.1} parent=1 // loop_footer
      %s31 = sadd.s32 1, %s27
    $region7: #{tpu_custom_call.1} parent=1 // loop_footer_branch
      %26 = sbr.rel target = $region3
    $region8: #{tpu_custom_call.1} parent=1 // loop_exit
      _
    %1330 = vsyncpa [#allocation3], 1
    %s1331 = scalar_lea.sflag [#allocation3], 1
    %1332 = vsyncpa %s1331, 1
    %1333 = vsyncpa [#allocation6], 1
    %1334 = vsyncpa [#allocation9], 1
    %1335 = vsyncpa [#allocation12], 1
    %1336 = vsyncpa [#allocation15], 1
    %1337 = vsyncpa [#allocation4], 1
    %s1338 = scalar_lea.sflag [#allocation4], 1
    %1339 = vsyncpa %s1338, 1

</llo_original>
